<compile_context>
chip_gen: v5e
topology: v5e:2x2
jax: 0.10.0
libtpu: 0.0.40
codegen_flags: <defaults>
</compile_context>

<pallas_src>
import functools

import numpy as np
import jax
import jax.numpy as jnp
from jax.experimental import pallas as pl
from jax.experimental.pallas import tpu as pltpu

ATOM_FLOAT_NAMES = ("van_der_waals_radis", "partial_charge", "mass")

DEFAULT_RBF_PARAMS = {
    "van_der_waals_radis": (np.arange(1, 3, 0.2), 10.0),   # K = 10
    "partial_charge": (np.arange(-1, 4, 0.25), 10.0),      # K = 20
    "mass": (np.arange(0, 2, 0.1), 10.0),                  # K = 20
}


def _round_up(x: int, m: int) -> int:
    return (x + m - 1) // m * m


def _detect_tpu():
    """Return (mxu_width, vmem_limit_bytes) for the current default device."""
    kind = ""
    try:
        dev = jax.devices()[0]
        if dev.platform == "tpu":
            kind = dev.device_kind.lower()
    except Exception:
        pass
    is_v7 = ("v7" in kind) or ("7x" in kind)
    is_v6 = "v6" in kind
    # v6e / v7x MXUs are 2x256x256; v5e and older are 128-wide native tiles.
    mxu_width = 256 if (is_v6 or is_v7) else 128
    # Explicit scoped-VMEM ceiling: v7x has 64 MiB physical per TensorCore,
    # v5e/v6e have 128 MiB; defaults (16/32 MiB) are raised so large row tiles
    # plus elementwise temporaries never trip the limit.
    vmem_limit_bytes = (48 << 20) if is_v7 else (80 << 20)
    return mxu_width, vmem_limit_bytes


# --------------------------------------------------------------------------- #
# Kernel
# --------------------------------------------------------------------------- #
def _fused_rbf_linear_kernel(x_ref, s_ref, c_ref, g_ref, w_ref, o_ref, *, n_sel):
    """Fused RBF expansion + linear projection for `pack` atoms per row.

    x_ref: (tr, FD)   packed atom float features (zero-padded to FD columns)
    s_ref: (FD, KD)   one-hot selector: lane k <- its feature's x column
    c_ref: (1, KD)    concatenated RBF centers (0 on padding lanes)
    g_ref: (1, KD)    -gamma per lane           (0 on padding lanes)
    w_ref: (KD, ED)   block-diagonal fused weight in bf16; the per-pack bias is
                      folded into one padding lane per packed atom (padding
                      lanes always produce rbf = exp(0) = 1).
    o_ref: (tr, ED)   lane-dense output (ED is a multiple of 128 when E | MXU)
    """
    x = x_ref[...]
    s = s_ref[...]
    # Exact per-lane feature selection: x_lanes[:, k] = x[:, feat_of_lane(k)].
    # Unrolled broadcast multiply-add against one-hot rows (VPU only; the RBF
    # argument stays bit-exact f32 — no MXU input truncation here).
    x_lanes = x[:, 0:1] * s[0:1, :]
    for j in range(1, n_sel):
        x_lanes = x_lanes + x[:, j:j + 1] * s[j:j + 1, :]
    d = x_lanes - c_ref[...]
    rbf = jnp.exp(g_ref[...] * (d * d))        # EUP exp, lane-dense, f32
    # Pinned single-pass bf16 MXU issue with f32 accumulation.
    acc = jnp.dot(rbf.astype(jnp.bfloat16), w_ref[...],
                  preferred_element_type=jnp.float32)
    o_ref[...] = acc.astype(o_ref.dtype)       # unmasked full-lane stores


# --------------------------------------------------------------------------- #
# Parameters (matches nn.Linear(len(centers), embed_dim) + xavier_normal_)
# --------------------------------------------------------------------------- #
def build_atom_float_embedding_params(embed_dim, key, rbf_params=None):
    if rbf_params is None:
        rbf_params = DEFAULT_RBF_PARAMS
    keys = jax.random.split(key, len(ATOM_FLOAT_NAMES))
    params = {}
    for k, name in zip(keys, ATOM_FLOAT_NAMES):
        centers, gamma = rbf_params[name]
        centers = np.asarray(centers, np.float32)
        kdim = int(centers.shape[0])
        # torch weight is (embed_dim, kdim); we keep its transpose (kdim, embed_dim).
        std = float(np.sqrt(2.0 / (kdim + embed_dim)))     # xavier_normal_
        weight_t = jax.random.normal(k, (kdim, embed_dim), jnp.float32) * std
        params[name] = {
            "centers": centers,
            "gamma": float(gamma),
            "weight_t": weight_t,
            "bias": jnp.zeros((embed_dim,), jnp.float32),  # init.constant_(0.0)
        }
    return params


# --------------------------------------------------------------------------- #
# One-time fusion of parameters into kernel-ready tables
# --------------------------------------------------------------------------- #
def fuse_atom_float_embedding_params(params, embed_dim, *, pack=None,
                                     names=ATOM_FLOAT_NAMES):
    """Build the fused/padded lookup tables ONCE (call outside the hot path)."""
    mxu_width, vmem_limit_bytes = _detect_tpu()
    if pack is None:
        if embed_dim <= mxu_width and mxu_width % embed_dim == 0:
            pack = mxu_width // embed_dim      # 4 on v6e/v7x for E=64, 2 on v5e
        elif embed_dim < 128 and 128 % embed_dim == 0:
            pack = 128 // embed_dim
        else:
            pack = 1                           # E >= 128 or not evenly packable

    num_feats = len(names)
    k_sizes = [int(np.asarray(params[nm]["centers"]).shape[0]) for nm in names]
    k_total = sum(k_sizes)
    ed = pack * embed_dim
    # Reserve at least `pack` spare padding lanes so the bias can always be
    # folded into rbf==1 lanes.
    kd = _round_up(pack * k_total + pack, 128)
    fd = _round_up(pack * num_feats, 8)
    n_sel = pack * num_feats

    c_all = np.concatenate(
        [np.asarray(params[nm]["centers"], np.float32) for nm in names])
    neg_g_all = np.concatenate(
        [np.full(k, -float(params[nm]["gamma"]), np.float32)
         for k, nm in zip(k_sizes, names)])
    sel = np.zeros((num_feats, k_total), np.float32)   # one-hot feature -> lane
    off = 0
    for f, k in enumerate(k_sizes):
        sel[f, off:off + k] = 1.0
        off += k

    s_big = np.zeros((fd, kd), np.float32)
    c_big = np.zeros((1, kd), np.float32)
    g_big = np.zeros((1, kd), np.float32)
    for p in range(pack):
        s_big[p * num_feats:(p + 1) * num_feats,
              p * k_total:(p + 1) * k_total] = sel
        c_big[0, p * k_total:(p + 1) * k_total] = c_all
        g_big[0, p * k_total:(p + 1) * k_total] = neg_g_all

    # Padding-lane invariant the bias fold relies on: selector, centers and
    # gamma are all exactly 0 on lanes >= pack*k_total, hence rbf there is
    # exp(-0 * (0 - 0)^2) == 1 for every row.  Keep these asserts if centers /
    # gamma construction ever changes.
    assert np.all(s_big[:, pack * k_total:] == 0.0)
    assert np.all(c_big[:, pack * k_total:] == 0.0)
    assert np.all(g_big[:, pack * k_total:] == 0.0)

    w_all = jnp.concatenate(
        [jnp.asarray(params[nm]["weight_t"], jnp.float32) for nm in names], axis=0)
    b_all = functools.reduce(
        lambda a, b: a + b,
        [jnp.asarray(params[nm]["bias"], jnp.float32) for nm in names])
    w_big = jnp.zeros((kd, ed), jnp.float32)
    for p in range(pack):                      # block-diagonal fused weight
        w_big = w_big.at[p * k_total:(p + 1) * k_total,
                         p * embed_dim:(p + 1) * embed_dim].set(w_all)
        # Bias fold: padding lane (pack*k_total + p) has rbf == 1 on every row,
        # so a weight row equal to the summed bias adds it via the MXU.
        # (bias is bf16-truncated by the weight cast below; it is 0.0 here.)
        w_big = w_big.at[pack * k_total + p,
                         p * embed_dim:(p + 1) * embed_dim].set(b_all)
    w_big = w_big.astype(jnp.bfloat16)         # pinned MXU input precision

    return {
        "s_big": jnp.asarray(s_big),
        "c_big": jnp.asarray(c_big),
        "g_big": jnp.asarray(g_big),
        "w_big": w_big,
        "embed_dim": embed_dim, "pack": pack, "num_feats": num_feats,
        "k_total": k_total, "fd": fd, "kd": kd, "ed": ed, "n_sel": n_sel,
        "names": tuple(names),
        "vmem_limit_bytes": vmem_limit_bytes,
    }


# --------------------------------------------------------------------------- #
# Forward wrapper
# --------------------------------------------------------------------------- #
def atom_float_embedding(feats, fused, *, n=None, tile_rows=4096,
                         out_dtype=jnp.bfloat16):
    """Fused AtomFloatEmbedding forward.

    feats: either a dict name -> (N,) float array, OR a pre-packed float32
           array of shape (ceil(N/pack), pack*num_feats) whose column p*F+f is
           feature f of atom row*pack+p (pass `n=` in that case) — the
           pre-packed path avoids the stack/pad/reshape HBM round-trip when the
           producer can emit that layout directly.
    fused: output of fuse_atom_float_embedding_params (tables built once).
    tile_rows: packed rows per grid step; clamped so the 1-D "parallel" grid
           always has >= 2 balanced steps (both v7x TensorCores stay busy).
    out_dtype: bf16 by default — output writeback dominates this kernel's HBM
           traffic; pass jnp.float32 for full-precision output.
    """
    names = fused["names"]
    pack, num_feats = fused["pack"], fused["num_feats"]
    fd, kd, ed = fused["fd"], fused["kd"], fused["ed"]
    embed_dim = fused["embed_dim"]

    prepacked = not isinstance(feats, dict)
    if prepacked:
        if n is None:
            raise ValueError("pass n= when supplying a pre-packed feature array")
        n = int(n)
    else:
        n = int(feats[names[0]].shape[0])

    # ---- row tiling: big tiles, but always >= 2 balanced parallel steps ----
    rows_needed = max(1, -(-n // pack))
    rows8 = _round_up(rows_needed, 8)
    if rows8 >= 16:
        tile_rows = min(tile_rows, _round_up(-(-rows8 // 2), 8))
    num_steps = max(1, -(-rows8 // tile_rows))
    tr = _round_up(-(-rows8 // num_steps), 8)
    n_rows = tr * num_steps
    n_pad = n_rows * pack

    # ---- pack & pad the per-atom features: (N, F) -> (n_rows, FD) ----------
    if prepacked:
        x_in = jnp.asarray(feats, jnp.float32)
        r, c = x_in.shape
        x_packed = jnp.pad(x_in, ((0, n_rows - r), (0, fd - c)))
    else:
        x_stack = jnp.stack([feats[nm].astype(jnp.float32) for nm in names],
                            axis=-1)
        x_stack = jnp.pad(x_stack, ((0, n_pad - n), (0, 0)))
        x_packed = x_stack.reshape(n_rows, pack * num_feats)
        if fd > pack * num_feats:
            x_packed = jnp.pad(x_packed, ((0, 0), (0, fd - pack * num_feats)))

    out_bytes = int(np.dtype(out_dtype).itemsize)
    cost = pl.CostEstimate(
        flops=int(2 * n_rows * kd * ed),                 # MXU matmul only
        transcendentals=int(n_rows * kd),
        bytes_accessed=int(4 * n_rows * fd + out_bytes * n_rows * ed
                           + 4 * (fd * kd + 2 * kd) + 2 * kd * ed),
    )

    out_packed = pl.pallas_call(
        functools.partial(_fused_rbf_linear_kernel, n_sel=fused["n_sel"]),
        out_shape=jax.ShapeDtypeStruct((n_rows, ed), out_dtype),
        grid_spec=pltpu.PrefetchScalarGridSpec(
            num_scalar_prefetch=0,
            grid=(num_steps,),
            in_specs=[
                pl.BlockSpec((tr, fd), lambda i: (i, 0)),    # packed features
                pl.BlockSpec((fd, kd), lambda i: (0, 0)),    # selector (resident)
                pl.BlockSpec((1, kd), lambda i: (0, 0)),     # centers  (resident)
                pl.BlockSpec((1, kd), lambda i: (0, 0)),     # -gamma   (resident)
                pl.BlockSpec((kd, ed), lambda i: (0, 0)),    # fused weight+bias
            ],
            out_specs=pl.BlockSpec((tr, ed), lambda i: (i, 0)),
        ),
        compiler_params=pltpu.CompilerParams(
            dimension_semantics=("parallel",),
            vmem_limit_bytes=fused["vmem_limit_bytes"]),
        cost_estimate=cost,
    )(x_packed, fused["s_big"], fused["c_big"], fused["g_big"], fused["w_big"])

    # un-pack: (n_rows, pack*E) row-major == (n_pad, E); drop padded atoms
    return out_packed.reshape(n_pad, embed_dim)[:n]


# --------------------------------------------------------------------------- #
# Pure-JAX references (intended PyTorch semantics)
# --------------------------------------------------------------------------- #
def atom_float_embedding_reference(feats, params, *, mxu_bf16=False):
    """mxu_bf16=True mimics the kernel's pinned bf16 MXU inputs (f32 accumulate)."""
    names = ATOM_FLOAT_NAMES
    n = feats[names[0]].shape[0]
    e = params[names[0]]["weight_t"].shape[1]
    out = jnp.zeros((n, e), jnp.float32)
    for nm in names:
        p = params[nm]
        x = feats[nm].astype(jnp.float32)[:, None]               # (N, 1)
        c = jnp.asarray(p["centers"], jnp.float32)[None, :]      # (1, K)
        rbf = jnp.exp(-p["gamma"] * (x - c) ** 2)                # (N, K)
        w = p["weight_t"]
        if mxu_bf16:
            rbf = rbf.astype(jnp.bfloat16)
            w = w.astype(jnp.bfloat16)
        out = out + jnp.dot(rbf, w, preferred_element_type=jnp.float32)
        out = out + p["bias"][None, :]
    return out


if __name__ == "__main__":
    embed_dim = 64          # pack = 4 on v6e/v7x (256-wide MXU), 2 on v5e
    n_atoms = 200           # small demo; the tiling targets much larger N

    key = jax.random.PRNGKey(0)
    k_param, k_vdw, k_chg, k_mass = jax.random.split(key, 4)
    params = build_atom_float_embedding_params(embed_dim, k_param)
    fused = fuse_atom_float_embedding_params(params, embed_dim)   # tables built ONCE

    feats = {
        "van_der_waals_radis": jax.random.uniform(
            k_vdw, (n_atoms,), jnp.float32, minval=1.0, maxval=3.0),
        "partial_charge": jax.random.uniform(
            k_chg, (n_atoms,), jnp.float32, minval=-1.0, maxval=4.0),
        "mass": jax.random.uniform(
            k_mass, (n_atoms,), jnp.float32, minval=0.0, maxval=2.0),
    }

    # --- f32 output path: tight check against a bf16-MXU-matched reference ---
    out_f32 = jax.block_until_ready(
        atom_float_embedding(feats, fused, out_dtype=jnp.float32))
    assert out_f32.shape == (n_atoms, embed_dim), out_f32.shape

    ref_matched = atom_float_embedding_reference(feats, params, mxu_bf16=True)
    err_tight = float(jnp.max(jnp.abs(out_f32 - ref_matched)))
    assert err_tight < 1e-3, f"tight check failed: max abs diff = {err_tight:e}"

    # --- semantic check against the full-f32 PyTorch-style reference ---------
    # (tolerance covers the pinned bf16 MXU-input truncation)
    ref_f32 = atom_float_embedding_reference(feats, params, mxu_bf16=False)
    err_sem = float(jnp.max(jnp.abs(out_f32 - ref_f32)))
    assert err_sem < 2e-2, f"semantic check failed: max abs diff = {err_sem:e}"

    # --- default bf16 output path (halved HBM writeback) ---------------------
    out_bf16 = jax.block_until_ready(atom_float_embedding(feats, fused))
    assert out_bf16.dtype == jnp.bfloat16 and out_bf16.shape == (n_atoms, embed_dim)
    err_bf16 = float(jnp.max(jnp.abs(out_bf16.astype(jnp.float32) - ref_f32)))
    assert err_bf16 < 2e-2, f"bf16 output check failed: max abs diff = {err_bf16:e}"

    print("KERNEL_OK")
</pallas_src>

<mosaic_0001>
module attributes {stable_mosaic.version = 11 : i64} {
  func.func @_fused_rbf_linear_kernel(%arg0: i32, %arg1: memref<56x8xf32, #tpu.memory_space<vmem>>, %arg2: memref<8x128xf32, #tpu.memory_space<vmem>>, %arg3: memref<1x128xf32, #tpu.memory_space<vmem>>, %arg4: memref<1x128xf32, #tpu.memory_space<vmem>>, %arg5: memref<128x128xbf16, #tpu.memory_space<vmem>>, %arg6: memref<56x128xf32, #tpu.memory_space<vmem>>) attributes {dimension_semantics = [#tpu.dimension_semantics<parallel>], iteration_bounds = array<i64: 2>, scalar_prefetch = 0 : i64, scratch_operands = 0 : i64, tpu.core_type = #tpu.core_type<tc>, window_params = [{transform_indices = @transform_0, window_bounds = array<i64: 56, 8>}, {pipeline_mode = #tpu.pipeline_mode<synchronous>, transform_indices = @transform_1, window_bounds = array<i64: 8, 128>}, {pipeline_mode = #tpu.pipeline_mode<synchronous>, transform_indices = @transform_2, window_bounds = array<i64: 1, 128>}, {pipeline_mode = #tpu.pipeline_mode<synchronous>, transform_indices = @transform_3, window_bounds = array<i64: 1, 128>}, {pipeline_mode = #tpu.pipeline_mode<synchronous>, transform_indices = @transform_4, window_bounds = array<i64: 128, 128>}, {transform_indices = @transform_5, window_bounds = array<i64: 56, 128>}]} {
    %c0 = arith.constant 0 : index
    %c0_0 = arith.constant 0 : index
    %0 = vector.load %arg1[%c0, %c0_0] : memref<56x8xf32, #tpu.memory_space<vmem>>, vector<56x8xf32>
    %c0_1 = arith.constant 0 : index
    %c0_2 = arith.constant 0 : index
    %1 = vector.load %arg2[%c0_1, %c0_2] : memref<8x128xf32, #tpu.memory_space<vmem>>, vector<8x128xf32>
    %2 = vector.extract_strided_slice %0 {offsets = [0, 0], sizes = [56, 1], strides = [1, 1]} : vector<56x8xf32> to vector<56x1xf32>
    %3 = vector.extract_strided_slice %1 {offsets = [0, 0], sizes = [1, 128], strides = [1, 1]} : vector<8x128xf32> to vector<1x128xf32>
    %4 = vector.broadcast %2 : vector<56x1xf32> to vector<56x128xf32>
    %5 = vector.broadcast %3 : vector<1x128xf32> to vector<56x128xf32>
    %6 = arith.mulf %4, %5 : vector<56x128xf32>
    %7 = vector.extract_strided_slice %0 {offsets = [0, 1], sizes = [56, 1], strides = [1, 1]} : vector<56x8xf32> to vector<56x1xf32>
    %8 = vector.extract_strided_slice %1 {offsets = [1, 0], sizes = [1, 128], strides = [1, 1]} : vector<8x128xf32> to vector<1x128xf32>
    %9 = vector.broadcast %7 : vector<56x1xf32> to vector<56x128xf32>
    %10 = vector.broadcast %8 : vector<1x128xf32> to vector<56x128xf32>
    %11 = arith.mulf %9, %10 : vector<56x128xf32>
    %12 = arith.addf %6, %11 : vector<56x128xf32>
    %13 = vector.extract_strided_slice %0 {offsets = [0, 2], sizes = [56, 1], strides = [1, 1]} : vector<56x8xf32> to vector<56x1xf32>
    %14 = vector.extract_strided_slice %1 {offsets = [2, 0], sizes = [1, 128], strides = [1, 1]} : vector<8x128xf32> to vector<1x128xf32>
    %15 = vector.broadcast %13 : vector<56x1xf32> to vector<56x128xf32>
    %16 = vector.broadcast %14 : vector<1x128xf32> to vector<56x128xf32>
    %17 = arith.mulf %15, %16 : vector<56x128xf32>
    %18 = arith.addf %12, %17 : vector<56x128xf32>
    %19 = vector.extract_strided_slice %0 {offsets = [0, 3], sizes = [56, 1], strides = [1, 1]} : vector<56x8xf32> to vector<56x1xf32>
    %20 = vector.extract_strided_slice %1 {offsets = [3, 0], sizes = [1, 128], strides = [1, 1]} : vector<8x128xf32> to vector<1x128xf32>
    %21 = vector.broadcast %19 : vector<56x1xf32> to vector<56x128xf32>
    %22 = vector.broadcast %20 : vector<1x128xf32> to vector<56x128xf32>
    %23 = arith.mulf %21, %22 : vector<56x128xf32>
    %24 = arith.addf %18, %23 : vector<56x128xf32>
    %25 = vector.extract_strided_slice %0 {offsets = [0, 4], sizes = [56, 1], strides = [1, 1]} : vector<56x8xf32> to vector<56x1xf32>
    %26 = vector.extract_strided_slice %1 {offsets = [4, 0], sizes = [1, 128], strides = [1, 1]} : vector<8x128xf32> to vector<1x128xf32>
    %27 = vector.broadcast %25 : vector<56x1xf32> to vector<56x128xf32>
    %28 = vector.broadcast %26 : vector<1x128xf32> to vector<56x128xf32>
    %29 = arith.mulf %27, %28 : vector<56x128xf32>
    %30 = arith.addf %24, %29 : vector<56x128xf32>
    %31 = vector.extract_strided_slice %0 {offsets = [0, 5], sizes = [56, 1], strides = [1, 1]} : vector<56x8xf32> to vector<56x1xf32>
    %32 = vector.extract_strided_slice %1 {offsets = [5, 0], sizes = [1, 128], strides = [1, 1]} : vector<8x128xf32> to vector<1x128xf32>
    %33 = vector.broadcast %31 : vector<56x1xf32> to vector<56x128xf32>
    %34 = vector.broadcast %32 : vector<1x128xf32> to vector<56x128xf32>
    %35 = arith.mulf %33, %34 : vector<56x128xf32>
    %36 = arith.addf %30, %35 : vector<56x128xf32>
    %c0_3 = arith.constant 0 : index
    %c0_4 = arith.constant 0 : index
    %37 = vector.load %arg3[%c0_3, %c0_4] : memref<1x128xf32, #tpu.memory_space<vmem>>, vector<1x128xf32>
    %38 = vector.broadcast %37 : vector<1x128xf32> to vector<56x128xf32>
    %39 = arith.subf %36, %38 : vector<56x128xf32>
    %c0_5 = arith.constant 0 : index
    %c0_6 = arith.constant 0 : index
    %40 = vector.load %arg4[%c0_5, %c0_6] : memref<1x128xf32, #tpu.memory_space<vmem>>, vector<1x128xf32>
    %41 = arith.mulf %39, %39 : vector<56x128xf32>
    %42 = vector.broadcast %40 : vector<1x128xf32> to vector<56x128xf32>
    %43 = arith.mulf %42, %41 : vector<56x128xf32>
    %44 = math.exp %43 : vector<56x128xf32>
    %45 = arith.truncf %44 : vector<56x128xf32> to vector<56x128xbf16>
    %c0_7 = arith.constant 0 : index
    %c0_8 = arith.constant 0 : index
    %46 = vector.load %arg5[%c0_7, %c0_8] : memref<128x128xbf16, #tpu.memory_space<vmem>>, vector<128x128xbf16>
    %cst = arith.constant dense<0.000000e+00> : vector<56x128xf32>
    %47 = tpu.matmul %45, %46, %cst {dimension_numbers = #tpu.dot_dimension_numbers<[1], [0], [0], [1], [0, 0, 1, 1], [], []>} : vector<56x128xbf16>, vector<128x128xbf16>, vector<56x128xf32> -> vector<56x128xf32>
    %c0_9 = arith.constant 0 : index
    %c0_10 = arith.constant 0 : index
    %48 = vector.load %arg6[%c0_9, %c0_10] : memref<56x128xf32, #tpu.memory_space<vmem>>, vector<56x128xf32>
    tpu.vector_store %arg6[%c0_9, %c0_10], %47 {strides = array<i32>} : memref<56x128xf32, #tpu.memory_space<vmem>>, vector<56x128xf32>,
    return
  }
  func.func @transform_0(%arg0: i32) -> (i32, i32) {
    %c0_i32 = arith.constant 0 : i32
    %c0_i32_0 = arith.constant 0 : i32
    return %arg0, %c0_i32 : i32, i32
  }
  func.func @transform_1(%arg0: i32) -> (i32, i32) {
    %c0_i32 = arith.constant 0 : i32
    %c0_i32_0 = arith.constant 0 : i32
    %c0_i32_1 = arith.constant 0 : i32
    return %c0_i32, %c0_i32_0 : i32, i32
  }
  func.func @transform_2(%arg0: i32) -> (i32, i32) {
    %c0_i32 = arith.constant 0 : i32
    %c0_i32_0 = arith.constant 0 : i32
    %c0_i32_1 = arith.constant 0 : i32
    return %c0_i32, %c0_i32_0 : i32, i32
  }
  func.func @transform_3(%arg0: i32) -> (i32, i32) {
    %c0_i32 = arith.constant 0 : i32
    %c0_i32_0 = arith.constant 0 : i32
    %c0_i32_1 = arith.constant 0 : i32
    return %c0_i32, %c0_i32_0 : i32, i32
  }
  func.func @transform_4(%arg0: i32) -> (i32, i32) {
    %c0_i32 = arith.constant 0 : i32
    %c0_i32_0 = arith.constant 0 : i32
    %c0_i32_1 = arith.constant 0 : i32
    return %c0_i32, %c0_i32_0 : i32, i32
  }
  func.func @transform_5(%arg0: i32) -> (i32, i32) {
    %c0_i32 = arith.constant 0 : i32
    %c0_i32_0 = arith.constant 0 : i32
    return %arg0, %c0_i32 : i32, i32
  }
}

</mosaic_0001>

<llo_original>
// kernel: tpu_custom_call.1
$region0: #{tpu_custom_call.1}
  #allocation0 [shape = 'u32[]', space=smem, size = 0x4, offset = 0x4, fixed_abs, tag = 'smem constant byte address 0x4 - core index']
  #allocation1 [shape = 'u32[72,128]{1,0:T(1,128)}', space=vmem, size = 0x9000, scoped, tag = 'internal scratch']
  %s0 = inlined_call_operand.vmem [shape: f32[112,8], index: 0, kind: input, shape index: {}]
  %s1 = inlined_call_operand.vmem [shape: f32[8,128], index: 1, kind: input, shape index: {}]
  %s2 = inlined_call_operand.vmem [shape: f32[1,128], index: 2, kind: input, shape index: {}]
  %s3 = inlined_call_operand.vmem [shape: f32[1,128], index: 3, kind: input, shape index: {}]
  %s4 = inlined_call_operand.vmem [shape: bf16[128,128], index: 4, kind: input, shape index: {}]
  %s5 = inlined_call_operand.hbm [shape: f32[112,128], index: 5, kind: output, shape index: {}]
  %s6 = sld [smem:[#allocation0]]
  $region53: #{tpu_custom_call.1} parent=0
    _
  %s8 = ssub.s32 1, %s6
  %s9 = scalar_select 0, %s8, %s6
  $region1: #{tpu_custom_call.1} parent=0
    #allocation2 [shape = 'u8[57344]{0}', space=vmem, size = 0xe000, scoped, tag = 'output window, operand 0']
    #allocation3 [shape = 's32[2]{0}', space=sflag, size = 0x8, scoped, tag = 'scoped memory for tpu_custom_call.1']
    %10 = vsyncpa [#allocation3], 0
    %s11 = scalar_lea.sflag [#allocation3], 1
    %12 = vsyncpa %s11, 0
    loop: start=0, step=1, limit=4
    $region2: #{tpu_custom_call.1} parent=1 // loop_pre_header
      _
    $region3: #{tpu_custom_call.1} parent=1 // loop_header
      %s14 = sphi 0, %s18
      %p15 = scmp.ge.s32.totalorder %s14, 4
      %s24 = sphi 0, %s26
      %s27 = sphi 0, %s24
      %s28 = sphi 0, %s27
      %s44 = sphi 0, %s28
      %s48 = sphi 0, %s48
      %s50 = sphi 0, %s48
      %s51 = sphi 0, %s50
      %s65 = sphi 0, %s51
      %s69 = sphi 0, %s69
      %s71 = sphi 0, %s69
      %s72 = sphi 0, %s71
      %s86 = sphi 0, %s72
      %s90 = sphi 0, %s90
      %s92 = sphi 0, %s90
      %s93 = sphi 0, %s92
      %s107 = sphi 0, %s93
      %s111 = sphi 0, %s111
      %s113 = sphi 0, %s111
      %s114 = sphi 0, %s113
      %s128 = sphi 0, %s114
      %s134 = sphi 0, %s136
      %s137 = sphi 0, %s134
      %s138 = sphi 0, %s137
      %s154 = sphi 0, %s138
    $region4: #{tpu_custom_call.1} parent=1 // loop_header_branch
      %17 = sbr.rel (%p15) target = $region8
    $region5: #{tpu_custom_call.1} parent=1 // loop_body
      %s19 = ssub.s32 %s14, 1
      %s20 = ssub.s32 %s14, 2
      %s21 = sadd.s32 %s14, 1
      %s22 = ssub.s32 %s14, %s21
      %p23 = scmp.eq.s32.totalorder %s22, 0
      %s25 = sadd.s32 %s24, 1
      %s26 = scalar_select %p23, %s24, %s25
      %p29 = pneg %p23
      %p30 = scmp.eq.s32.totalorder %s14, 1
      %p31 = por %p29, %p30
      %p32 = scmp.ne.s32.totalorder %s24, %s27
      %p33 = scmp.eq.s32.totalorder %s14, 0
      %p34 = por %p32, %p33
      %p35 = scmp.ne.s32.totalorder %s24, %s27
      %p36 = scmp.eq.s32.totalorder %s19, 1
      %p37 = por %p35, %p36
      %p38 = scmp.ne.s32.totalorder %s27, %s28
      %p39 = scmp.eq.s32.totalorder %s19, 0
      %p40 = por %p38, %p39
      %p41 = scmp.ne.s32.totalorder %s27, %s28
      %p42 = scmp.eq.s32.totalorder %s20, 1
      %p43 = por %p41, %p42
      %p45 = scmp.ne.s32.totalorder %s28, %s44
      %p46 = scmp.eq.s32.totalorder %s20, 0
      %p47 = por %p45, %p46
      %s49 = sadd.s32 %s48, 1
      %p52 = scmp.eq.s32.totalorder %s14, 1
      %p53 = scmp.ne.s32.totalorder %s48, %s50
      %p54 = scmp.eq.s32.totalorder %s14, 0
      %p55 = por %p53, %p54
      %p56 = scmp.ne.s32.totalorder %s48, %s50
      %p57 = scmp.eq.s32.totalorder %s19, 1
      %p58 = por %p56, %p57
      %p59 = scmp.ne.s32.totalorder %s50, %s51
      %p60 = scmp.eq.s32.totalorder %s19, 0
      %p61 = por %p59, %p60
      %p62 = scmp.ne.s32.totalorder %s50, %s51
      %p63 = scmp.eq.s32.totalorder %s20, 1
      %p64 = por %p62, %p63
      %p66 = scmp.ne.s32.totalorder %s51, %s65
      %p67 = scmp.eq.s32.totalorder %s20, 0
      %p68 = por %p66, %p67
      %s70 = sadd.s32 %s69, 1
      %p73 = scmp.eq.s32.totalorder %s14, 1
      %p74 = scmp.ne.s32.totalorder %s69, %s71
      %p75 = scmp.eq.s32.totalorder %s14, 0
      %p76 = por %p74, %p75
      %p77 = scmp.ne.s32.totalorder %s69, %s71
      %p78 = scmp.eq.s32.totalorder %s19, 1
      %p79 = por %p77, %p78
      %p80 = scmp.ne.s32.totalorder %s71, %s72
      %p81 = scmp.eq.s32.totalorder %s19, 0
      %p82 = por %p80, %p81
      %p83 = scmp.ne.s32.totalorder %s71, %s72
      %p84 = scmp.eq.s32.totalorder %s20, 1
      %p85 = por %p83, %p84
      %p87 = scmp.ne.s32.totalorder %s72, %s86
      %p88 = scmp.eq.s32.totalorder %s20, 0
      %p89 = por %p87, %p88
      %s91 = sadd.s32 %s90, 1
      %p94 = scmp.eq.s32.totalorder %s14, 1
      %p95 = scmp.ne.s32.totalorder %s90, %s92
      %p96 = scmp.eq.s32.totalorder %s14, 0
      %p97 = por %p95, %p96
      %p98 = scmp.ne.s32.totalorder %s90, %s92
      %p99 = scmp.eq.s32.totalorder %s19, 1
      %p100 = por %p98, %p99
      %p101 = scmp.ne.s32.totalorder %s92, %s93
      %p102 = scmp.eq.s32.totalorder %s19, 0
      %p103 = por %p101, %p102
      %p104 = scmp.ne.s32.totalorder %s92, %s93
      %p105 = scmp.eq.s32.totalorder %s20, 1
      %p106 = por %p104, %p105
      %p108 = scmp.ne.s32.totalorder %s93, %s107
      %p109 = scmp.eq.s32.totalorder %s20, 0
      %p110 = por %p108, %p109
      %s112 = sadd.s32 %s111, 1
      %p115 = scmp.eq.s32.totalorder %s14, 1
      %p116 = scmp.ne.s32.totalorder %s111, %s113
      %p117 = scmp.eq.s32.totalorder %s14, 0
      %p118 = por %p116, %p117
      %p119 = scmp.ne.s32.totalorder %s111, %s113
      %p120 = scmp.eq.s32.totalorder %s19, 1
      %p121 = por %p119, %p120
      %p122 = scmp.ne.s32.totalorder %s113, %s114
      %p123 = scmp.eq.s32.totalorder %s19, 0
      %p124 = por %p122, %p123
      %p125 = scmp.ne.s32.totalorder %s113, %s114
      %p126 = scmp.eq.s32.totalorder %s20, 1
      %p127 = por %p125, %p126
      %p129 = scmp.ne.s32.totalorder %s114, %s128
      %p130 = scmp.eq.s32.totalorder %s20, 0
      %p131 = por %p129, %p130
      %s132 = ssub.s32 %s14, %s21
      %p133 = scmp.eq.s32.totalorder %s132, 0
      %s135 = sadd.s32 %s134, 1
      %s136 = scalar_select %p133, %s134, %s135
      %p139 = pneg %p133
      %p140 = scmp.eq.s32.totalorder %s14, 1
      %p141 = por %p139, %p140
      %p142 = scmp.ne.s32.totalorder %s134, %s137
      %p143 = scmp.eq.s32.totalorder %s14, 0
      %p144 = por %p142, %p143
      %p145 = scmp.ne.s32.totalorder %s134, %s137
      %p146 = scmp.eq.s32.totalorder %s19, 1
      %p147 = por %p145, %p146
      %p148 = scmp.ne.s32.totalorder %s137, %s138
      %p149 = scmp.eq.s32.totalorder %s19, 0
      %p150 = por %p148, %p149
      %p151 = scmp.ne.s32.totalorder %s137, %s138
      %p152 = scmp.eq.s32.totalorder %s20, 1
      %p153 = por %p151, %p152
      %p155 = scmp.ne.s32.totalorder %s138, %s154
      %p156 = scmp.eq.s32.totalorder %s20, 0
      %p157 = por %p155, %p156
      %p158 = scmp.le.s32.totalorder 1, %s14
      %p159 = scmp.lt.s32.totalorder %s14, 3
      %p160 = pnand %p158, %p159
      %p161 = pneg %p160
      // Predicated region
      $region9: #{tpu_custom_call.1} parent=5 // pred_check
        _
      $region10: #{tpu_custom_call.1} parent=5 // pred_check_branch
        %163 = sbr.rel (%p160) target = $region12
      $region11: #{tpu_custom_call.1} parent=5 // pred_region
        %s164 = ssub.s32 %s14, 1
        // Predicated region
        $region13: #{tpu_custom_call.1} parent=11 // pred_check
          %p165 = pneg %p61
        $region14: #{tpu_custom_call.1} parent=11 // pred_check_branch
          %167 = sbr.rel (%p165) target = $region16
        $region15: #{tpu_custom_call.1} parent=11 // pred_region
          _
        $region16: #{tpu_custom_call.1} parent=11 // pred_fallthru
          _
        // Predicated region
        $region17: #{tpu_custom_call.1} parent=11 // pred_check
          %p168 = pneg %p82
        $region18: #{tpu_custom_call.1} parent=11 // pred_check_branch
          %170 = sbr.rel (%p168) target = $region20
        $region19: #{tpu_custom_call.1} parent=11 // pred_region
          _
        $region20: #{tpu_custom_call.1} parent=11 // pred_fallthru
          _
        // Predicated region
        $region21: #{tpu_custom_call.1} parent=11 // pred_check
          %p171 = pneg %p103
        $region22: #{tpu_custom_call.1} parent=11 // pred_check_branch
          %173 = sbr.rel (%p171) target = $region24
        $region23: #{tpu_custom_call.1} parent=11 // pred_region
          _
        $region24: #{tpu_custom_call.1} parent=11 // pred_fallthru
          _
        // Predicated region
        $region25: #{tpu_custom_call.1} parent=11 // pred_check
          %p174 = pneg %p124
        $region26: #{tpu_custom_call.1} parent=11 // pred_check_branch
          %176 = sbr.rel (%p174) target = $region28
        $region27: #{tpu_custom_call.1} parent=11 // pred_region
          _
        $region28: #{tpu_custom_call.1} parent=11 // pred_fallthru
          _
      $region12: #{tpu_custom_call.1} parent=5 // pred_fallthru
        _
      %p177 = scmp.lt.s32.totalorder %s14, 2
      // Predicated region
      $region29: #{tpu_custom_call.1} parent=5 // pred_check
        %p178 = pneg %p177
      $region30: #{tpu_custom_call.1} parent=5 // pred_check_branch
        %180 = sbr.rel (%p178) target = $region32
      $region31: #{tpu_custom_call.1} parent=5 // pred_region
        // Predicated region
        $region33: #{tpu_custom_call.1} parent=31 // pred_check
          %p181 = pneg %p34
        $region34: #{tpu_custom_call.1} parent=31 // pred_check_branch
          %183 = sbr.rel (%p181) target = $region36
        $region35: #{tpu_custom_call.1} parent=31 // pred_region
          %s184 = smul.u32 7, %s14
          %p185 = scmp.lt.s32.totalorder %s184, 13
          %s186 = scalar_select %p185, %s184, 13
          %s187 = smul.addr %s186, 8
          %s188 = scalar_lea.vmem %s0, %s187
          %s189 = smul.u32 7, %s14
        $region36: #{tpu_custom_call.1} parent=31 // pred_fallthru
          _
      $region32: #{tpu_custom_call.1} parent=5 // pred_fallthru
        _
      %p190 = scmp.le.s32.totalorder 1, %s14
      %p191 = scmp.lt.s32.totalorder %s14, 3
      %p192 = pnand %p190, %p191
      %p193 = pneg %p192
      // Predicated region
      $region37: #{tpu_custom_call.1} parent=5 // pred_check
        _
      $region38: #{tpu_custom_call.1} parent=5 // pred_check_branch
        %195 = sbr.rel (%p192) target = $region40
      $region39: #{tpu_custom_call.1} parent=5 // pred_region
        %s196 = ssub.s32 %s14, 1
        %s197 = smul.u32 7, %s19
        %p198 = scmp.lt.s32.totalorder %s197, 13
        %s199 = scalar_select %p198, %s197, 13
        %s200 = smul.addr %s199, 8
        %s201 = scalar_lea.vmem %s0, %s200
        %p202 = pneg %p40
        %p203 = pneg %p37
        %p204 = pneg %p61
        %p205 = pneg %p58
        %p206 = pneg %p82
        %p207 = pneg %p79
        %p208 = pneg %p103
        %p209 = pneg %p100
        %p210 = pneg %p124
        %p211 = pneg %p121
        %p212 = pneg %p150
        %p213 = pneg %p147
        %s214 = sand.u32 %s137, 1
        %s215 = scalar_lea.sflag [#allocation3], %s214
        %s216 = sand.u32 %s137, 1
        %s217 = smul.addr %s216, 56
        %s218 = scalar_lea.vmem [#allocation2], %s217
        %s219 = smul.u32 7, %s19
        %p220 = scmp.lt.s32.totalorder %s219, 13
        %s221 = scalar_select %p220, %s219, 13
        %s222 = smul.addr %s221, 8
        %s223 = scalar_lea.vmem %s0, %s222
        %s224 = smul.u32 7, %s19
        %s225 = smul.u32 7, %s19
        %v226 = vld [vmem:[%s223] sm:$0xff]
        %v227 = vld [vmem:[%s223 + $0x8] sm:$0xff]
        %v228 = vld [vmem:[%s223 + $0x10] sm:$0xff]
        %v229 = vld [vmem:[%s223 + $0x18] sm:$0xff]
        %v230 = vld [vmem:[%s223 + $0x20] sm:$0xff]
        %v231 = vld [vmem:[%s223 + $0x28] sm:$0xff]
        %v232 = vld [vmem:[%s223 + $0x30] sm:$0xff]
        %v233 = vld [vmem:[%s1] sm:$0xff]
        %235 = vset.pattern.permute.xlu0 0
        %236 = vperm.xlu0 %235, %v226
        %v237 = vpop.permute.xlu0 %236
        %240 = vset.pattern.permute.xlu0 0
        %241 = vperm.xlu0 %240, %v227
        %v242 = vpop.permute.xlu0 %241
        %245 = vset.pattern.permute.xlu0 0
        %246 = vperm.xlu0 %245, %v228
        %v247 = vpop.permute.xlu0 %246
        %250 = vset.pattern.permute.xlu0 0
        %251 = vperm.xlu0 %250, %v229
        %v252 = vpop.permute.xlu0 %251
        %255 = vset.pattern.permute.xlu0 0
        %256 = vperm.xlu0 %255, %v230
        %v257 = vpop.permute.xlu0 %256
        %260 = vset.pattern.permute.xlu0 0
        %261 = vperm.xlu0 %260, %v231
        %v262 = vpop.permute.xlu0 %261
        %265 = vset.pattern.permute.xlu0 0
        %266 = vperm.xlu0 %265, %v232
        %v267 = vpop.permute.xlu0 %266
        %v269 = vperm.slane %v233, 0
        %v270 = vmul.f32 %v237, %v269
        %v271 = vmul.f32 %v242, %v269
        %v272 = vmul.f32 %v247, %v269
        %v273 = vmul.f32 %v252, %v269
        %v274 = vmul.f32 %v257, %v269
        %v275 = vmul.f32 %v262, %v269
        %v276 = vmul.f32 %v267, %v269
        %277 = vset.pattern.permute.xlu0 1
        %278 = vperm.xlu0 %277, %v226
        %v279 = vpop.permute.xlu0 %278
        %281 = vset.pattern.permute.xlu0 1
        %282 = vperm.xlu0 %281, %v227
        %v283 = vpop.permute.xlu0 %282
        %285 = vset.pattern.permute.xlu0 1
        %286 = vperm.xlu0 %285, %v228
        %v287 = vpop.permute.xlu0 %286
        %289 = vset.pattern.permute.xlu0 1
        %290 = vperm.xlu0 %289, %v229
        %v291 = vpop.permute.xlu0 %290
        %293 = vset.pattern.permute.xlu0 1
        %294 = vperm.xlu0 %293, %v230
        %v295 = vpop.permute.xlu0 %294
        %297 = vset.pattern.permute.xlu0 1
        %298 = vperm.xlu0 %297, %v231
        %v299 = vpop.permute.xlu0 %298
        %301 = vset.pattern.permute.xlu0 1
        %302 = vperm.xlu0 %301, %v232
        %v303 = vpop.permute.xlu0 %302
        %v305 = vperm.slane %v233, 1
        %v306 = vmul.f32 %v279, %v305
        %v307 = vmul.f32 %v283, %v305
        %v308 = vmul.f32 %v287, %v305
        %v309 = vmul.f32 %v291, %v305
        %v310 = vmul.f32 %v295, %v305
        %v311 = vmul.f32 %v299, %v305
        %v312 = vmul.f32 %v303, %v305
        %v313 = vadd.f32 %v270, %v306
        %v314 = vadd.f32 %v271, %v307
        %v315 = vadd.f32 %v272, %v308
        %v316 = vadd.f32 %v273, %v309
        %v317 = vadd.f32 %v274, %v310
        %v318 = vadd.f32 %v275, %v311
        %v319 = vadd.f32 %v276, %v312
        %320 = vset.pattern.permute.xlu0 2
        %321 = vperm.xlu0 %320, %v226
        %v322 = vpop.permute.xlu0 %321
        %324 = vset.pattern.permute.xlu0 2
        %325 = vperm.xlu0 %324, %v227
        %v326 = vpop.permute.xlu0 %325
        %328 = vset.pattern.permute.xlu0 2
        %329 = vperm.xlu0 %328, %v228
        %v330 = vpop.permute.xlu0 %329
        %332 = vset.pattern.permute.xlu0 2
        %333 = vperm.xlu0 %332, %v229
        %v334 = vpop.permute.xlu0 %333
        %336 = vset.pattern.permute.xlu0 2
        %337 = vperm.xlu0 %336, %v230
        %v338 = vpop.permute.xlu0 %337
        %340 = vset.pattern.permute.xlu0 2
        %341 = vperm.xlu0 %340, %v231
        %v342 = vpop.permute.xlu0 %341
        %344 = vset.pattern.permute.xlu0 2
        %345 = vperm.xlu0 %344, %v232
        %v346 = vpop.permute.xlu0 %345
        %v348 = vperm.slane %v233, 2
        %v349 = vmul.f32 %v322, %v348
        %v350 = vmul.f32 %v326, %v348
        %v351 = vmul.f32 %v330, %v348
        %v352 = vmul.f32 %v334, %v348
        %v353 = vmul.f32 %v338, %v348
        %v354 = vmul.f32 %v342, %v348
        %v355 = vmul.f32 %v346, %v348
        %v356 = vadd.f32 %v313, %v349
        %v357 = vadd.f32 %v314, %v350
        %v358 = vadd.f32 %v315, %v351
        %v359 = vadd.f32 %v316, %v352
        %v360 = vadd.f32 %v317, %v353
        %v361 = vadd.f32 %v318, %v354
        %v362 = vadd.f32 %v319, %v355
        %363 = vset.pattern.permute.xlu0 3
        %364 = vperm.xlu0 %363, %v226
        %v365 = vpop.permute.xlu0 %364
        %367 = vset.pattern.permute.xlu0 3
        %368 = vperm.xlu0 %367, %v227
        %v369 = vpop.permute.xlu0 %368
        %371 = vset.pattern.permute.xlu0 3
        %372 = vperm.xlu0 %371, %v228
        %v373 = vpop.permute.xlu0 %372
        %375 = vset.pattern.permute.xlu0 3
        %376 = vperm.xlu0 %375, %v229
        %v377 = vpop.permute.xlu0 %376
        %379 = vset.pattern.permute.xlu0 3
        %380 = vperm.xlu0 %379, %v230
        %v381 = vpop.permute.xlu0 %380
        %383 = vset.pattern.permute.xlu0 3
        %384 = vperm.xlu0 %383, %v231
        %v385 = vpop.permute.xlu0 %384
        %387 = vset.pattern.permute.xlu0 3
        %388 = vperm.xlu0 %387, %v232
        %v389 = vpop.permute.xlu0 %388
        %v391 = vperm.slane %v233, 3
        %v392 = vmul.f32 %v365, %v391
        %v393 = vmul.f32 %v369, %v391
        %v394 = vmul.f32 %v373, %v391
        %v395 = vmul.f32 %v377, %v391
        %v396 = vmul.f32 %v381, %v391
        %v397 = vmul.f32 %v385, %v391
        %v398 = vmul.f32 %v389, %v391
        %v399 = vadd.f32 %v356, %v392
        %v400 = vadd.f32 %v357, %v393
        %v401 = vadd.f32 %v358, %v394
        %v402 = vadd.f32 %v359, %v395
        %v403 = vadd.f32 %v360, %v396
        %v404 = vadd.f32 %v361, %v397
        %v405 = vadd.f32 %v362, %v398
        %406 = vset.pattern.permute.xlu0 4
        %407 = vperm.xlu0 %406, %v226
        %v408 = vpop.permute.xlu0 %407
        %410 = vset.pattern.permute.xlu0 4
        %411 = vperm.xlu0 %410, %v227
        %v412 = vpop.permute.xlu0 %411
        %414 = vset.pattern.permute.xlu0 4
        %415 = vperm.xlu0 %414, %v228
        %v416 = vpop.permute.xlu0 %415
        %418 = vset.pattern.permute.xlu0 4
        %419 = vperm.xlu0 %418, %v229
        %v420 = vpop.permute.xlu0 %419
        %422 = vset.pattern.permute.xlu0 4
        %423 = vperm.xlu0 %422, %v230
        %v424 = vpop.permute.xlu0 %423
        %426 = vset.pattern.permute.xlu0 4
        %427 = vperm.xlu0 %426, %v231
        %v428 = vpop.permute.xlu0 %427
        %430 = vset.pattern.permute.xlu0 4
        %431 = vperm.xlu0 %430, %v232
        %v432 = vpop.permute.xlu0 %431
        %v434 = vperm.slane %v233, 4
        %v435 = vmul.f32 %v408, %v434
        %v436 = vmul.f32 %v412, %v434
        %v437 = vmul.f32 %v416, %v434
        %v438 = vmul.f32 %v420, %v434
        %v439 = vmul.f32 %v424, %v434
        %v440 = vmul.f32 %v428, %v434
        %v441 = vmul.f32 %v432, %v434
        %v442 = vadd.f32 %v399, %v435
        %v443 = vadd.f32 %v400, %v436
        %v444 = vadd.f32 %v401, %v437
        %v445 = vadd.f32 %v402, %v438
        %v446 = vadd.f32 %v403, %v439
        %v447 = vadd.f32 %v404, %v440
        %v448 = vadd.f32 %v405, %v441
        %449 = vset.pattern.permute.xlu0 5
        %450 = vperm.xlu0 %449, %v226
        %v451 = vpop.permute.xlu0 %450
        %453 = vset.pattern.permute.xlu0 5
        %454 = vperm.xlu0 %453, %v227
        %v455 = vpop.permute.xlu0 %454
        %457 = vset.pattern.permute.xlu0 5
        %458 = vperm.xlu0 %457, %v228
        %v459 = vpop.permute.xlu0 %458
        %461 = vset.pattern.permute.xlu0 5
        %462 = vperm.xlu0 %461, %v229
        %v463 = vpop.permute.xlu0 %462
        %465 = vset.pattern.permute.xlu0 5
        %466 = vperm.xlu0 %465, %v230
        %v467 = vpop.permute.xlu0 %466
        %469 = vset.pattern.permute.xlu0 5
        %470 = vperm.xlu0 %469, %v231
        %v471 = vpop.permute.xlu0 %470
        %473 = vset.pattern.permute.xlu0 5
        %474 = vperm.xlu0 %473, %v232
        %v475 = vpop.permute.xlu0 %474
        %v477 = vperm.slane %v233, 5
        %v478 = vmul.f32 %v451, %v477
        %v479 = vmul.f32 %v455, %v477
        %v480 = vmul.f32 %v459, %v477
        %v481 = vmul.f32 %v463, %v477
        %v482 = vmul.f32 %v467, %v477
        %v483 = vmul.f32 %v471, %v477
        %v484 = vmul.f32 %v475, %v477
        %v485 = vadd.f32 %v442, %v478
        %v486 = vadd.f32 %v443, %v479
        %v487 = vadd.f32 %v444, %v480
        %v488 = vadd.f32 %v445, %v481
        %v489 = vadd.f32 %v446, %v482
        %v490 = vadd.f32 %v447, %v483
        %v491 = vadd.f32 %v448, %v484
        %v492 = vld [vmem:[%s2] sm:$0x1]
        %v494 = vperm.slane %v492, 0
        %v496 = vsub.f32 %v485, %v494
        %v497 = vsub.f32 %v486, %v494
        %v498 = vsub.f32 %v487, %v494
        %v499 = vsub.f32 %v488, %v494
        %v500 = vsub.f32 %v489, %v494
        %v501 = vsub.f32 %v490, %v494
        %v502 = vsub.f32 %v491, %v494
        %v503 = vld [vmem:[%s3] sm:$0x1]
        %v504 = vmul.f32 %v496, %v496
        %v505 = vmul.f32 %v497, %v497
        %v506 = vmul.f32 %v498, %v498
        %v507 = vmul.f32 %v499, %v499
        %v508 = vmul.f32 %v500, %v500
        %v509 = vmul.f32 %v501, %v501
        %v510 = vmul.f32 %v502, %v502
        %v512 = vperm.slane %v503, 0
        %v514 = vmul.f32 %v512, %v504
        %v515 = vmul.f32 %v512, %v505
        %v516 = vmul.f32 %v512, %v506
        %v517 = vmul.f32 %v512, %v507
        %v518 = vmul.f32 %v512, %v508
        %v519 = vmul.f32 %v512, %v509
        %v520 = vmul.f32 %v512, %v510
        %v521 = vmul.f32 %v514, 1.442695
        %v522 = vpow.pop %v521
        %v523 = vmul.f32 %v515, 1.442695
        %v524 = vpow.pop %v523
        %v525 = vmul.f32 %v516, 1.442695
        %v526 = vpow.pop %v525
        %v527 = vmul.f32 %v517, 1.442695
        %v528 = vpow.pop %v527
        %v529 = vmul.f32 %v518, 1.442695
        %v530 = vpow.pop %v529
        %v531 = vmul.f32 %v519, 1.442695
        %v532 = vpow.pop %v531
        %v533 = vmul.f32 %v520, 1.442695
        %v534 = vpow.pop %v533
        %v535 = vpack.c.bf16 %v524, %v522
        %v536 = vpack.c.bf16 %v528, %v526
        %v537 = vpack.c.bf16 %v532, %v530
        %v538 = vpack.c.bf16 %v534, %v534
        %v539 = vld [vmem:[%s4] sm:$0xf]
        %v540 = vld [vmem:[%s4 + $0x4] sm:$0xf]
        %v541 = vld [vmem:[%s4 + $0x8] sm:$0xf]
        %v542 = vld [vmem:[%s4 + $0xc] sm:$0xf]
        %v543 = vld [vmem:[%s4 + $0x10] sm:$0xf]
        %v544 = vld [vmem:[%s4 + $0x14] sm:$0xf]
        %v545 = vld [vmem:[%s4 + $0x18] sm:$0xf]
        %v546 = vld [vmem:[%s4 + $0x1c] sm:$0xf]
        %v547 = vld [vmem:[%s4 + $0x20] sm:$0xf]
        %v548 = vld [vmem:[%s4 + $0x24] sm:$0xf]
        %v549 = vld [vmem:[%s4 + $0x28] sm:$0xf]
        %v550 = vld [vmem:[%s4 + $0x2c] sm:$0xf]
        %v551 = vld [vmem:[%s4 + $0x30] sm:$0xf]
        %v552 = vld [vmem:[%s4 + $0x34] sm:$0xf]
        %v553 = vld [vmem:[%s4 + $0x38] sm:$0xf]
        %v554 = vld [vmem:[%s4 + $0x3c] sm:$0xf]
        %v571 = vunpack.c.l.b16 %v539
        %v572 = vunpack.c.l.b16 %v540
        %v573 = vunpack.c.l.b16 %v541
        %v574 = vunpack.c.l.b16 %v542
        %v575 = vunpack.c.l.b16 %v543
        %v576 = vunpack.c.l.b16 %v544
        %v577 = vunpack.c.l.b16 %v545
        %v578 = vunpack.c.l.b16 %v546
        %v579 = vunpack.c.l.b16 %v547
        %v580 = vunpack.c.l.b16 %v548
        %v581 = vunpack.c.l.b16 %v549
        %v582 = vunpack.c.l.b16 %v550
        %v583 = vunpack.c.l.b16 %v551
        %v584 = vunpack.c.l.b16 %v552
        %v585 = vunpack.c.l.b16 %v553
        %v586 = vunpack.c.l.b16 %v554
        %v587 = vpack.c.b16 %v572, %v571
        %v588 = vpack.c.b16 %v574, %v573
        %v589 = vpack.c.b16 %v576, %v575
        %v590 = vpack.c.b16 %v578, %v577
        %v591 = vpack.c.b16 %v580, %v579
        %v592 = vpack.c.b16 %v582, %v581
        %v593 = vpack.c.b16 %v584, %v583
        %v594 = vpack.c.b16 %v586, %v585
        %603 = vmatpush.bf16.msra.mxu0 %v594
        %604 = vmatpush.bf16.msra.mxu0 %v593
        %605 = vmatpush.bf16.msra.mxu0 %v592
        %606 = vmatpush.bf16.msra.mxu0 %v591
        %607 = vmatpush.bf16.msra.mxu0 %v590
        %608 = vmatpush.bf16.msra.mxu0 %v589
        %609 = vmatpush.bf16.msra.mxu0 %v588
        %610 = vmatpush.bf16.msra.mxu0 %v587
        %611 = vmatmul.bf16.gmra.mxu0 %v535
        %v612 = vpop.f32.mrf.mxu0
        %v613 = vadd.f32 0.0, %v612
        %v614 = vpop.f32.mrf.mxu0
        %v615 = vadd.f32 0.0, %v614
        %616 = vmatmul.bf16.gmra.mxu0 %v536
        %v617 = vpop.f32.mrf.mxu0
        %v618 = vadd.f32 0.0, %v617
        %v619 = vpop.f32.mrf.mxu0
        %v620 = vadd.f32 0.0, %v619
        %621 = vmatmul.bf16.gmra.mxu0 %v537
        %v622 = vpop.f32.mrf.mxu0
        %v623 = vadd.f32 0.0, %v622
        %v624 = vpop.f32.mrf.mxu0
        %v625 = vadd.f32 0.0, %v624
        %626 = vmatmul.bf16.gmra.mxu0 %v538
        %v627 = vpop.f32.mrf.mxu0
        %v628 = vadd.f32 0.0, %v627
        %v629 = vpop.f32.mrf.mxu0
        %630 = vdwg.mxu0
        %631 = vst [vmem:[%s218] sm:$0xff] %v613
        %632 = vst [vmem:[%s218 + $0x8] sm:$0xff] %v615
        %633 = vst [vmem:[%s218 + $0x10] sm:$0xff] %v618
        %634 = vst [vmem:[%s218 + $0x18] sm:$0xff] %v620
        %635 = vst [vmem:[%s218 + $0x20] sm:$0xff] %v623
        %636 = vst [vmem:[%s218 + $0x28] sm:$0xff] %v625
        %637 = vst [vmem:[%s218 + $0x30] sm:$0xff] %v628
        %s638 = sand.u32 %s137, 1
        %s639 = scalar_lea.sflag [#allocation3], %s638
        %s640 = sand.u32 %s137, 1
        %s641 = smul.addr %s640, 56
        %s642 = scalar_lea.vmem [#allocation2], %s641
        // Predicated region
        $region41: #{tpu_custom_call.1} parent=39 // pred_check
          %p643 = pneg %p147
        $region42: #{tpu_custom_call.1} parent=39 // pred_check_branch
          %645 = sbr.rel (%p643) target = $region44
        $region43: #{tpu_custom_call.1} parent=39 // pred_region
          %s646 = smul.u32 7, %s19
          %648 = vsyncadd %s639, 0
          %s649 = smul.addr %s646, 8
          %s650 = scalar_lea.hbm %s5, %s649
          %s651 = sshll.u32 %s642, 4
          %s652 = int_to_ptr.vmem [resolvable:$true] %s651
          %s653 = sshll.u32 %s650, 4
          %s654 = int_to_ptr.hbm [resolvable:$true] %s653
          %659 = dma.vmem_to_hbm [thread:$0]  %s652, 896, %s654, %s639, 128, 128, 8
        $region44: #{tpu_custom_call.1} parent=39 // pred_fallthru
          _
      $region40: #{tpu_custom_call.1} parent=5 // pred_fallthru
        _
      %p660 = scmp.le.s32.totalorder 2, %s14
      // Predicated region
      $region45: #{tpu_custom_call.1} parent=5 // pred_check
        %p661 = pneg %p660
      $region46: #{tpu_custom_call.1} parent=5 // pred_check_branch
        %663 = sbr.rel (%p661) target = $region48
      $region47: #{tpu_custom_call.1} parent=5 // pred_region
        %s664 = ssub.s32 %s14, 2
        // Predicated region
        $region49: #{tpu_custom_call.1} parent=47 // pred_check
          %p665 = pneg %p153
        $region50: #{tpu_custom_call.1} parent=47 // pred_check_branch
          %667 = sbr.rel (%p665) target = $region52
        $region51: #{tpu_custom_call.1} parent=47 // pred_region
          %s668 = sand.u32 %s138, 1
          %s669 = scalar_lea.sflag [#allocation3], %s668
          %s670 = sand.u32 %s138, 1
          %s671 = smul.addr %s670, 56
          %s672 = scalar_lea.vmem [#allocation2], %s671
          %674 = dma.done %s669, 896
        $region52: #{tpu_custom_call.1} parent=47 // pred_fallthru
          _
      $region48: #{tpu_custom_call.1} parent=5 // pred_fallthru
        _
    $region6: #{tpu_custom_call.1} parent=1 // loop_footer
      %s18 = sadd.s32 1, %s14
    $region7: #{tpu_custom_call.1} parent=1 // loop_footer_branch
      %13 = sbr.rel target = $region3
    $region8: #{tpu_custom_call.1} parent=1 // loop_exit
      _
    %675 = vsyncpa [#allocation3], 1
    %s676 = scalar_lea.sflag [#allocation3], 1
    %677 = vsyncpa %s676, 1

</llo_original>
